<compile_context>
chip_gen: v5e
topology: v5e:2x2
jax: 0.10.0
libtpu: 0.0.40
codegen_flags: <defaults>
</compile_context>

<pallas_src>
import jax
import jax.numpy as jnp
from jax.experimental import pallas as pl
from jax.experimental.pallas import tpu as pltpu

NUM_CLASSES = 4
EPS = 1e-6
LANE = 128
TARGET_ROWS = 1024            # rows of 128 pixels per grid step (~131K pixels)
PAD_CLASS = NUM_CLASSES       # padded pixels: weight 0 -> zero contribution


def _largest_divisor_at_most(n, cap):
    cap = max(1, min(n, cap))
    for d in range(cap, 0, -1):
        if n % d == 0:
            return d
    return 1


def _pick_row_tile(r, target):
    """Rows-of-128 per grid step: full image if small, else a multiple of 8."""
    if r <= target:
        return r
    start = (target // 8) * 8
    for d in range(start, 7, -8):       # prefer a divisor of r (no padding)
        if r % d == 0:
            return d
    return start                        # no friendly divisor; wrapper pads R up


def _balanced_ce_kernel(w_ref, logits_ref, tgt_ref, num_ref, den_ref):
    """One grid step.
    w_ref:      SMEM (4,) f32 class weights
    logits_ref: (bn, C, rt, 128) logits (any float dtype)
    tgt_ref:    (bn, rt, 128) int32 targets (PAD_CLASS for padded pixels)
    num_ref:    (1, 1, 1, 128) f32 per-lane partial sum of weight * NLL
    den_ref:    (1, 1, 1, 128) f32 per-lane partial sum of weight
    """
    x = logits_ref[...].astype(jnp.float32)          # (bn, C, rt, 128)
    tgt = tgt_ref[...]                               # (bn, rt, 128)

    # Free slices along the untiled class axis -> 4 dense (bn, rt, 128) slabs.
    xs = [x[:, c] for c in range(NUM_CLASSES)]

    # Numerically stable log-sum-exp, fully elementwise (VPU + EUP, no XLU).
    m = jnp.maximum(jnp.maximum(xs[0], xs[1]), jnp.maximum(xs[2], xs[3]))
    s = (jnp.exp(xs[0] - m) + jnp.exp(xs[1] - m)
         + jnp.exp(xs[2] - m) + jnp.exp(xs[3] - m))
    lse = jnp.log(s) + m

    # Target-class logit and per-pixel weight via an unrolled 4-way select
    # chain with scalar weights from SMEM (no one-hot matmul, no vector weight
    # operand).  Padded pixels (tgt == PAD_CLASS) hit no branch -> weight 0.
    picked = jnp.zeros_like(m)
    wpix = jnp.zeros_like(m)
    for c in range(NUM_CLASSES):
        hit = tgt == c
        picked = jnp.where(hit, xs[c], picked)
        wpix = jnp.where(hit, w_ref[c], wpix)

    num = wpix * (lse - picked)

    # Per-block, lane-dense partial sums; final (tiny) reduce in the wrapper.
    num_ref[...] = jnp.sum(num, axis=(0, 1), keepdims=True)[None]
    den_ref[...] = jnp.sum(wpix, axis=(0, 1), keepdims=True)[None]


def balanced_bce_loss(output_nchw, target_nhw, class_weight):
    """output_nchw: (N, 4, H, W) float (f32 or bf16); target_nhw: (N, H, W) int;
    class_weight: (4,) float.  Returns scalar f32 loss."""
    N, C, H, W = output_nchw.shape
    assert C == NUM_CLASSES
    HW = H * W
    R = pl.cdiv(HW, LANE)                       # 128-pixel rows per image

    rt = _pick_row_tile(R, TARGET_ROWS)         # rows per grid step
    bn = _largest_divisor_at_most(N, max(1, TARGET_ROWS // rt))  # images / step
    R_pad = pl.cdiv(R, rt) * rt
    HW_pad = R_pad * LANE

    # Free, contiguous reshapes of NCHW; padding only if HW % 128 != 0 (or R
    # has no tile-friendly divisor).  Padded pixels get PAD_CLASS -> weight 0.
    logits = output_nchw.reshape(N, C, HW)
    tgt = target_nhw.reshape(N, HW).astype(jnp.int32)
    if HW_pad != HW:
        logits = jnp.pad(logits, ((0, 0), (0, 0), (0, HW_pad - HW)))
        tgt = jnp.pad(tgt, ((0, 0), (0, HW_pad - HW)), constant_values=PAD_CLASS)
    logits = logits.reshape(N, C, R_pad, LANE)          # (8,128)-dense spatial
    tgt = tgt.reshape(N, R_pad, LANE)
    w = class_weight.astype(jnp.float32).reshape(NUM_CLASSES)

    grid = (N // bn, R_pad // rt)

    # TODO(synk): on v7x, verify via the bundle dump whether the single EUP
    # slot (4 exp + 1 log per pixel) becomes the binding unit; if so, consider
    # bf16 exp inputs.  On v5e/v6e this kernel is HBM-streaming bound.
    num_parts, den_parts = pl.pallas_call(
        _balanced_ce_kernel,
        out_shape=(
            jax.ShapeDtypeStruct((grid[0], grid[1], 1, LANE), jnp.float32),
            jax.ShapeDtypeStruct((grid[0], grid[1], 1, LANE), jnp.float32),
        ),
        grid_spec=pltpu.PrefetchScalarGridSpec(
            num_scalar_prefetch=0,
            grid=grid,
            in_specs=[
                # tiny (4,) class-weight table lives in SMEM (scalar reads)
                pl.BlockSpec(memory_space=pltpu.MemorySpace.SMEM),
                pl.BlockSpec((bn, C, rt, LANE), lambda n, r: (n, 0, r, 0)),
                pl.BlockSpec((bn, rt, LANE), lambda n, r: (n, r, 0)),
            ],
            out_specs=(
                pl.BlockSpec((1, 1, 1, LANE), lambda n, r: (n, r, 0, 0)),
                pl.BlockSpec((1, 1, 1, LANE), lambda n, r: (n, r, 0, 0)),
            ),
        ),
        compiler_params=pltpu.CompilerParams(
            # Per-block partial outputs carry no cross-iteration state, so both
            # axes are safely parallel (lets v7x megacore split the grid).
            dimension_semantics=("parallel", "parallel"),
            vmem_limit_bytes=32 * 1024 * 1024,
        ),
    )(w, logits, tgt)

    return jnp.sum(num_parts) / jnp.sum(den_parts)


def make_class_weights(target_init):
    """Replicates BalancedBCELoss.__init__: weight[c] = 1/(count(target==c)+eps)."""
    counts = jnp.array(
        [jnp.sum(target_init == c).astype(jnp.float32) for c in range(NUM_CLASSES)]
    )
    return 1.0 / (counts + EPS)


def _reference_loss(output_nchw, target_nhw, class_weight):
    """Plain-JAX reference of weighted CrossEntropyLoss (reduction='mean')."""
    N, C, H, W = output_nchw.shape
    logits = jnp.transpose(output_nchw, (0, 2, 3, 1)).reshape(-1, C).astype(jnp.float32)
    tgt = target_nhw.reshape(-1)
    logp = jax.nn.log_softmax(logits, axis=-1)
    nll = -jnp.take_along_axis(logp, tgt[:, None], axis=-1)[:, 0]
    w = class_weight[tgt]
    return jnp.sum(w * nll) / jnp.sum(w)


if __name__ == "__main__":
    key = jax.random.PRNGKey(0)
    k1, k2, k3 = jax.random.split(key, 3)

    N, C, H, W = 2, NUM_CLASSES, 16, 16

    # target used at __init__ time to build the class weights
    target_init = jax.random.randint(k1, (N, H, W), 0, NUM_CLASSES, dtype=jnp.int32)
    class_weight = make_class_weights(target_init)

    # forward-pass inputs
    output = jax.random.normal(k2, (N, C, H, W), dtype=jnp.float32)
    target = jax.random.randint(k3, (N, H, W), 0, NUM_CLASSES, dtype=jnp.int32)

    loss = balanced_bce_loss(output, target, class_weight)
    loss = jax.block_until_ready(loss)

    ref = _reference_loss(output, target, class_weight)
    assert jnp.isfinite(loss), "loss is not finite"
    assert jnp.allclose(loss, ref, rtol=1e-5, atol=1e-5), (loss, ref)

    print("KERNEL_OK")
</pallas_src>

<mosaic_0001>
module attributes {stable_mosaic.version = 11 : i64} {
  func.func @_balanced_ce_kernel(%arg0: i32, %arg1: i32, %arg2: memref<4xf32, #tpu.memory_space<smem>>, %arg3: memref<2x4x2x128xf32, #tpu.memory_space<vmem>>, %arg4: memref<2x2x128xi32, #tpu.memory_space<vmem>>, %arg5: memref<1x1x1x128xf32, #tpu.memory_space<vmem>>, %arg6: memref<1x1x1x128xf32, #tpu.memory_space<vmem>>) attributes {dimension_semantics = [#tpu.dimension_semantics<parallel>, #tpu.dimension_semantics<parallel>], iteration_bounds = array<i64: 1, 1>, scalar_prefetch = 0 : i64, scratch_operands = 0 : i64, tpu.core_type = #tpu.core_type<tc>, window_params = [{transform_indices = @transform_0, window_bounds = array<i64: 4>}, {transform_indices = @transform_1, window_bounds = array<i64: 2, 4, 2, 128>}, {transform_indices = @transform_2, window_bounds = array<i64: 2, 2, 128>}, {transform_indices = @transform_3, window_bounds = array<i64: 1, 1, 1, 128>}, {transform_indices = @transform_4, window_bounds = array<i64: 1, 1, 1, 128>}]} {
    %c0 = arith.constant 0 : index
    %c0_0 = arith.constant 0 : index
    %c0_1 = arith.constant 0 : index
    %c0_2 = arith.constant 0 : index
    %0 = vector.load %arg3[%c0, %c0_0, %c0_1, %c0_2] : memref<2x4x2x128xf32, #tpu.memory_space<vmem>>, vector<2x4x2x128xf32>
    %c0_3 = arith.constant 0 : index
    %c0_4 = arith.constant 0 : index
    %c0_5 = arith.constant 0 : index
    %1 = vector.load %arg4[%c0_3, %c0_4, %c0_5] : memref<2x2x128xi32, #tpu.memory_space<vmem>>, vector<2x2x128xi32>
    %2 = vector.extract_strided_slice %0 {offsets = [0, 0, 0, 0], sizes = [2, 1, 2, 128], strides = [1, 1, 1, 1]} : vector<2x4x2x128xf32> to vector<2x1x2x128xf32>
    %3 = vector.shape_cast %2 : vector<2x1x2x128xf32> to vector<2x2x128xf32>
    %4 = vector.extract_strided_slice %0 {offsets = [0, 1, 0, 0], sizes = [2, 1, 2, 128], strides = [1, 1, 1, 1]} : vector<2x4x2x128xf32> to vector<2x1x2x128xf32>
    %5 = vector.shape_cast %4 : vector<2x1x2x128xf32> to vector<2x2x128xf32>
    %6 = vector.extract_strided_slice %0 {offsets = [0, 2, 0, 0], sizes = [2, 1, 2, 128], strides = [1, 1, 1, 1]} : vector<2x4x2x128xf32> to vector<2x1x2x128xf32>
    %7 = vector.shape_cast %6 : vector<2x1x2x128xf32> to vector<2x2x128xf32>
    %8 = vector.extract_strided_slice %0 {offsets = [0, 3, 0, 0], sizes = [2, 1, 2, 128], strides = [1, 1, 1, 1]} : vector<2x4x2x128xf32> to vector<2x1x2x128xf32>
    %9 = vector.shape_cast %8 : vector<2x1x2x128xf32> to vector<2x2x128xf32>
    %10 = arith.maximumf %3, %5 : vector<2x2x128xf32>
    %11 = arith.maximumf %7, %9 : vector<2x2x128xf32>
    %12 = arith.maximumf %10, %11 : vector<2x2x128xf32>
    %13 = arith.subf %3, %12 : vector<2x2x128xf32>
    %14 = math.exp %13 : vector<2x2x128xf32>
    %15 = arith.subf %5, %12 : vector<2x2x128xf32>
    %16 = math.exp %15 : vector<2x2x128xf32>
    %17 = arith.addf %14, %16 : vector<2x2x128xf32>
    %18 = arith.subf %7, %12 : vector<2x2x128xf32>
    %19 = math.exp %18 : vector<2x2x128xf32>
    %20 = arith.addf %17, %19 : vector<2x2x128xf32>
    %21 = arith.subf %9, %12 : vector<2x2x128xf32>
    %22 = math.exp %21 : vector<2x2x128xf32>
    %23 = arith.addf %20, %22 : vector<2x2x128xf32>
    %24 = math.log %23 : vector<2x2x128xf32>
    %25 = arith.addf %24, %12 : vector<2x2x128xf32>
    %cst = arith.constant 0.000000e+00 : f32
    %26 = vector.broadcast %cst : f32 to vector<2x2x128xf32>
    %cst_6 = arith.constant 0.000000e+00 : f32
    %27 = vector.broadcast %cst_6 : f32 to vector<2x2x128xf32>
    %c0_i32 = arith.constant 0 : i32
    %28 = vector.broadcast %c0_i32 : i32 to vector<2x2x128xi32>
    %29 = arith.cmpi eq, %1, %28 : vector<2x2x128xi32>
    %30 = arith.select %29, %3, %26 : vector<2x2x128xi1>, vector<2x2x128xf32>
    %c0_7 = arith.constant 0 : index
    %31 = memref.load %arg2[%c0_7] : memref<4xf32, #tpu.memory_space<smem>>
    %32 = vector.broadcast %31 : f32 to vector<2x2x128xf32>
    %33 = arith.select %29, %32, %27 : vector<2x2x128xi1>, vector<2x2x128xf32>
    %c1_i32 = arith.constant 1 : i32
    %34 = vector.broadcast %c1_i32 : i32 to vector<2x2x128xi32>
    %35 = arith.cmpi eq, %1, %34 : vector<2x2x128xi32>
    %36 = arith.select %35, %5, %30 : vector<2x2x128xi1>, vector<2x2x128xf32>
    %c1 = arith.constant 1 : index
    %37 = memref.load %arg2[%c1] : memref<4xf32, #tpu.memory_space<smem>>
    %38 = vector.broadcast %37 : f32 to vector<2x2x128xf32>
    %39 = arith.select %35, %38, %33 : vector<2x2x128xi1>, vector<2x2x128xf32>
    %c2_i32 = arith.constant 2 : i32
    %40 = vector.broadcast %c2_i32 : i32 to vector<2x2x128xi32>
    %41 = arith.cmpi eq, %1, %40 : vector<2x2x128xi32>
    %42 = arith.select %41, %7, %36 : vector<2x2x128xi1>, vector<2x2x128xf32>
    %c2 = arith.constant 2 : index
    %43 = memref.load %arg2[%c2] : memref<4xf32, #tpu.memory_space<smem>>
    %44 = vector.broadcast %43 : f32 to vector<2x2x128xf32>
    %45 = arith.select %41, %44, %39 : vector<2x2x128xi1>, vector<2x2x128xf32>
    %c3_i32 = arith.constant 3 : i32
    %46 = vector.broadcast %c3_i32 : i32 to vector<2x2x128xi32>
    %47 = arith.cmpi eq, %1, %46 : vector<2x2x128xi32>
    %48 = arith.select %47, %9, %42 : vector<2x2x128xi1>, vector<2x2x128xf32>
    %c3 = arith.constant 3 : index
    %49 = memref.load %arg2[%c3] : memref<4xf32, #tpu.memory_space<smem>>
    %50 = vector.broadcast %49 : f32 to vector<2x2x128xf32>
    %51 = arith.select %47, %50, %45 : vector<2x2x128xi1>, vector<2x2x128xf32>
    %52 = arith.subf %25, %48 : vector<2x2x128xf32>
    %53 = arith.mulf %51, %52 : vector<2x2x128xf32>
    %cst_8 = arith.constant dense<0.000000e+00> : vector<128xf32>
    %54 = vector.multi_reduction <add>, %53, %cst_8 [0, 1] : vector<2x2x128xf32> to vector<128xf32>
    %55 = vector.shape_cast %54 : vector<128xf32> to vector<1x1x128xf32>
    %56 = vector.shape_cast %55 : vector<1x1x128xf32> to vector<1x1x1x128xf32>
    %c0_9 = arith.constant 0 : index
    %c0_10 = arith.constant 0 : index
    %c0_11 = arith.constant 0 : index
    %c0_12 = arith.constant 0 : index
    %57 = vector.load %arg5[%c0_9, %c0_10, %c0_11, %c0_12] : memref<1x1x1x128xf32, #tpu.memory_space<vmem>>, vector<1x1x1x128xf32>
    tpu.vector_store %arg5[%c0_9, %c0_10, %c0_11, %c0_12], %56 {strides = array<i32>} : memref<1x1x1x128xf32, #tpu.memory_space<vmem>>, vector<1x1x1x128xf32>,
    %cst_13 = arith.constant dense<0.000000e+00> : vector<128xf32>
    %58 = vector.multi_reduction <add>, %51, %cst_13 [0, 1] : vector<2x2x128xf32> to vector<128xf32>
    %59 = vector.shape_cast %58 : vector<128xf32> to vector<1x1x128xf32>
    %60 = vector.shape_cast %59 : vector<1x1x128xf32> to vector<1x1x1x128xf32>
    %c0_14 = arith.constant 0 : index
    %c0_15 = arith.constant 0 : index
    %c0_16 = arith.constant 0 : index
    %c0_17 = arith.constant 0 : index
    %61 = vector.load %arg6[%c0_14, %c0_15, %c0_16, %c0_17] : memref<1x1x1x128xf32, #tpu.memory_space<vmem>>, vector<1x1x1x128xf32>
    tpu.vector_store %arg6[%c0_14, %c0_15, %c0_16, %c0_17], %60 {strides = array<i32>} : memref<1x1x1x128xf32, #tpu.memory_space<vmem>>, vector<1x1x1x128xf32>,
    return
  }
  func.func @transform_0(%arg0: i32, %arg1: i32) -> i32 {
    %c0_i32 = arith.constant 0 : i32
    %c0_i32_0 = arith.constant 0 : i32
    return %c0_i32 : i32
  }
  func.func @transform_1(%arg0: i32, %arg1: i32) -> (i32, i32, i32, i32) {
    %c0_i32 = arith.constant 0 : i32
    %c0_i32_0 = arith.constant 0 : i32
    %c0_i32_1 = arith.constant 0 : i32
    return %arg0, %c0_i32, %arg1, %c0_i32_0 : i32, i32, i32, i32
  }
  func.func @transform_2(%arg0: i32, %arg1: i32) -> (i32, i32, i32) {
    %c0_i32 = arith.constant 0 : i32
    %c0_i32_0 = arith.constant 0 : i32
    return %arg0, %arg1, %c0_i32 : i32, i32, i32
  }
  func.func @transform_3(%arg0: i32, %arg1: i32) -> (i32, i32, i32, i32) {
    %c0_i32 = arith.constant 0 : i32
    %c0_i32_0 = arith.constant 0 : i32
    %c0_i32_1 = arith.constant 0 : i32
    return %arg0, %arg1, %c0_i32, %c0_i32_0 : i32, i32, i32, i32
  }
  func.func @transform_4(%arg0: i32, %arg1: i32) -> (i32, i32, i32, i32) {
    %c0_i32 = arith.constant 0 : i32
    %c0_i32_0 = arith.constant 0 : i32
    %c0_i32_1 = arith.constant 0 : i32
    return %arg0, %arg1, %c0_i32, %c0_i32_0 : i32, i32, i32, i32
  }
}

</mosaic_0001>

<llo_original>
// kernel: tpu_custom_call.1
$region0: #{tpu_custom_call.1}
  #allocation0 [shape = 'u32[]', space=smem, size = 0x4, offset = 0x4, fixed_abs, tag = 'smem constant byte address 0x4 - core index']
  #allocation1 [shape = 'u32[72,128]{1,0:T(1,128)}', space=vmem, size = 0x9000, scoped, tag = 'internal scratch']
  %s0 = inlined_call_operand.hbm [shape: f32[4], index: 0, kind: input, shape index: {}]
  %s1 = inlined_call_operand.hbm [shape: f32[2,4,2,128], index: 1, kind: input, shape index: {}]
  %s2 = inlined_call_operand.hbm [shape: s32[2,2,128], index: 2, kind: input, shape index: {}]
  %s3 = inlined_call_operand.hbm [shape: f32[1,1,1,128], index: 3, kind: output, shape index: {0}]
  %s4 = inlined_call_operand.hbm [shape: f32[1,1,1,128], index: 4, kind: output, shape index: {1}]
  %5 = xla_tuple %s3, %s4
  %s6 = sld [smem:[#allocation0]]
  $region42: #{tpu_custom_call.1} parent=0
    _
  %s8 = ssub.s32 1, %s6
  %s9 = scalar_select 0, %s8, %s6
  $region1: #{tpu_custom_call.1} parent=0
    #allocation2 [shape = 'u8[512]{0}', space=smem, size = 0x200, scoped, tag = 'input window, operand 0, single buffered']
    #allocation3 [shape = 's32[1]{0}', space=sflag, size = 0x4, scoped, tag = 'scoped memory for tpu_custom_call.1']
    #allocation4 [shape = 's32[1]{0}', space=sflag, size = 0x4, scoped, tag = 'scoped memory for tpu_custom_call.1']
    #allocation5 [shape = 's32[1]{0}', space=sflag, size = 0x4, scoped, tag = 'scoped memory for tpu_custom_call.1']
    #allocation6 [shape = 'u8[8192]{0}', space=vmem, size = 0x2000, scoped, tag = 'input window, operand 1, single buffered']
    #allocation7 [shape = 'u8[2048]{0}', space=vmem, size = 0x800, scoped, tag = 'input window, operand 2, single buffered']
    #allocation8 [shape = 's32[1]{0}', space=sflag, size = 0x4, scoped, tag = 'scoped memory for tpu_custom_call.1']
    #allocation9 [shape = 'u8[512]{0}', space=vmem, size = 0x400, scoped, tag = 'output window, operand 0, single buffered']
    #allocation10 [shape = 'u8[512]{0}', space=vmem, size = 0x400, scoped, tag = 'output window, operand 1, single buffered']
    #allocation11 [shape = 's32[1]{0}', space=sflag, size = 0x4, scoped, tag = 'scoped memory for tpu_custom_call.1']
    %10 = vsyncpa [#allocation5], 0
    %11 = vsyncpa [#allocation3], 0
    %12 = vsyncpa [#allocation8], 0
    %13 = vsyncpa [#allocation4], 0
    %14 = vsyncpa [#allocation11], 0
    // Predicated region
    $region2: #{tpu_custom_call.1} parent=1 // pred_check
      _
    $region3: #{tpu_custom_call.1} parent=1 // pred_check_branch
      %16 = sbr.rel (0) target = $region5
    $region4: #{tpu_custom_call.1} parent=1 // pred_region
      %18 = vsyncadd [#allocation5], 0
      %s20 = sshll.u32 %s0, 4
      %s21 = int_to_ptr.hbm [resolvable:$true] %s20
      %23 = dma.hbm_to_smem %s21, 16, [#allocation2], [#allocation5]
    $region5: #{tpu_custom_call.1} parent=1 // pred_fallthru
      _
    // Predicated region
    $region6: #{tpu_custom_call.1} parent=1 // pred_check
      _
    $region7: #{tpu_custom_call.1} parent=1 // pred_check_branch
      %25 = sbr.rel (0) target = $region9
    $region8: #{tpu_custom_call.1} parent=1 // pred_region
      %27 = vsyncadd [#allocation3], 0
      %s28 = sshll.u32 %s1, 4
      %s29 = int_to_ptr.hbm [resolvable:$true] %s28
      %s30 = sshll.u32 [#allocation6], 4
      %s31 = int_to_ptr.vmem [resolvable:$true] %s30
      %36 = dma.hbm_to_vmem [thread:$0]  %s29, 256, %s31, [#allocation3], 32, 32, 2
    $region9: #{tpu_custom_call.1} parent=1 // pred_fallthru
      _
    // Predicated region
    $region10: #{tpu_custom_call.1} parent=1 // pred_check
      _
    $region11: #{tpu_custom_call.1} parent=1 // pred_check_branch
      %38 = sbr.rel (0) target = $region13
    $region12: #{tpu_custom_call.1} parent=1 // pred_region
      %40 = vsyncadd [#allocation8], 0
      %s41 = sshll.u32 %s2, 4
      %s42 = int_to_ptr.hbm [resolvable:$true] %s41
      %s43 = sshll.u32 [#allocation7], 4
      %s44 = int_to_ptr.vmem [resolvable:$true] %s43
      %49 = dma.hbm_to_vmem [thread:$0]  %s42, 64, %s44, [#allocation8], 32, 32, 2
    $region13: #{tpu_custom_call.1} parent=1 // pred_fallthru
      _
    // Predicated region
    $region14: #{tpu_custom_call.1} parent=1 // pred_check
      _
    $region15: #{tpu_custom_call.1} parent=1 // pred_check_branch
      %51 = sbr.rel (0) target = $region17
    $region16: #{tpu_custom_call.1} parent=1 // pred_region
      %53 = dma.done [#allocation5], 16
    $region17: #{tpu_custom_call.1} parent=1 // pred_fallthru
      _
    // Predicated region
    $region18: #{tpu_custom_call.1} parent=1 // pred_check
      _
    $region19: #{tpu_custom_call.1} parent=1 // pred_check_branch
      %55 = sbr.rel (0) target = $region21
    $region20: #{tpu_custom_call.1} parent=1 // pred_region
      %57 = dma.done [#allocation3], 256
    $region21: #{tpu_custom_call.1} parent=1 // pred_fallthru
      _
    // Predicated region
    $region22: #{tpu_custom_call.1} parent=1 // pred_check
      _
    $region23: #{tpu_custom_call.1} parent=1 // pred_check_branch
      %59 = sbr.rel (0) target = $region25
    $region24: #{tpu_custom_call.1} parent=1 // pred_region
      %61 = dma.done [#allocation8], 64
    $region25: #{tpu_custom_call.1} parent=1 // pred_fallthru
      _
    %62 = sfence
    %v63 = vld [vmem:[#allocation6] sm:$0x3]
    %v64 = vld [vmem:[#allocation6 + $0x2] sm:$0x3]
    %v65 = vld [vmem:[#allocation6 + $0x4] sm:$0x3]
    %v66 = vld [vmem:[#allocation6 + $0x6] sm:$0x3]
    %v67 = vld [vmem:[#allocation6 + $0x8] sm:$0x3]
    %v68 = vld [vmem:[#allocation6 + $0xa] sm:$0x3]
    %v69 = vld [vmem:[#allocation6 + $0xc] sm:$0x3]
    %v70 = vld [vmem:[#allocation6 + $0xe] sm:$0x3]
    %v71 = vld [vmem:[#allocation7] sm:$0x3]
    %v72 = vld [vmem:[#allocation7 + $0x2] sm:$0x3]
    %v73 = vmax.f32 %v63, %v64
    %v74 = vmax.f32 %v67, %v68
    %v75 = vmax.f32 %v65, %v66
    %v76 = vmax.f32 %v69, %v70
    %v77 = vmax.f32 %v73, %v75
    %v78 = vmax.f32 %v74, %v76
    %v79 = vsub.f32 %v63, %v77
    %v80 = vsub.f32 %v67, %v78
    %v81 = vmul.f32 %v79, 1.442695
    %v82 = vpow.pop %v81
    %v83 = vmul.f32 %v80, 1.442695
    %v84 = vpow.pop %v83
    %v85 = vsub.f32 %v64, %v77
    %v86 = vsub.f32 %v68, %v78
    %v87 = vmul.f32 %v85, 1.442695
    %v88 = vpow.pop %v87
    %v89 = vmul.f32 %v86, 1.442695
    %v90 = vpow.pop %v89
    %v91 = vadd.f32 %v82, %v88
    %v92 = vadd.f32 %v84, %v90
    %v93 = vsub.f32 %v65, %v77
    %v94 = vsub.f32 %v69, %v78
    %v95 = vmul.f32 %v93, 1.442695
    %v96 = vpow.pop %v95
    %v97 = vmul.f32 %v94, 1.442695
    %v98 = vpow.pop %v97
    %v99 = vadd.f32 %v91, %v96
    %v100 = vadd.f32 %v92, %v98
    %v101 = vsub.f32 %v66, %v77
    %v102 = vsub.f32 %v70, %v78
    %v103 = vmul.f32 %v101, 1.442695
    %v104 = vpow.pop %v103
    %v105 = vmul.f32 %v102, 1.442695
    %v106 = vpow.pop %v105
    %v107 = vadd.f32 %v99, %v104
    %v108 = vadd.f32 %v100, %v106
    %v109 = vlog2.pop %v107
    %v110 = vmul.f32 %v109, 0.6931472
    %v111 = vlog2.pop %v108
    %v112 = vmul.f32 %v111, 0.6931472
    %v113 = vadd.f32 %v110, %v77
    %v114 = vadd.f32 %v112, %v78
    %vm115 = vcmp.eq.s32.totalorder %v71, 0
    %vm116 = vcmp.eq.s32.totalorder %v72, 0
    %v117 = vsel %vm115, %v63, 0.0
    %v118 = vsel %vm116, %v67, 0.0
    %s119 = sld [smem:[#allocation2]]
    %v120 = vstv %s119
    %v121 = vsel %vm115, %v120, 0.0
    %v122 = vsel %vm116, %v120, 0.0
    %vm123 = vcmp.eq.s32.totalorder %v71, 1
    %vm124 = vcmp.eq.s32.totalorder %v72, 1
    %v125 = vsel %vm123, %v64, %v117
    %v126 = vsel %vm124, %v68, %v118
    %s127 = sld [smem:[#allocation2 + $0x1]]
    %v128 = vstv %s127
    %v129 = vsel %vm123, %v128, %v121
    %v130 = vsel %vm124, %v128, %v122
    %vm131 = vcmp.eq.s32.totalorder %v71, 2
    %vm132 = vcmp.eq.s32.totalorder %v72, 2
    %v133 = vsel %vm131, %v65, %v125
    %v134 = vsel %vm132, %v69, %v126
    %s135 = sld [smem:[#allocation2 + $0x2]]
    %v136 = vstv %s135
    %v137 = vsel %vm131, %v136, %v129
    %v138 = vsel %vm132, %v136, %v130
    %vm139 = vcmp.eq.s32.totalorder %v71, 3
    %vm140 = vcmp.eq.s32.totalorder %v72, 3
    %v141 = vsel %vm139, %v66, %v133
    %v142 = vsel %vm140, %v70, %v134
    %s143 = sld [smem:[#allocation2 + $0x3]]
    %v144 = vstv %s143
    %v145 = vsel %vm139, %v144, %v137
    %v146 = vsel %vm140, %v144, %v138
    %v147 = vsub.f32 %v113, %v141
    %v148 = vsub.f32 %v114, %v142
    %v149 = vmul.f32 %v145, %v147
    %v150 = vmul.f32 %v146, %v148
    %vm151 = vcmask 1041408
    %v152 = vsel %vm151, %v149, 0.0
    %v153 = vsel %vm151, %v150, 0.0
    %v154 = vadd.f32 %v152, %v153
    %v155 = vrot.slane %v154, 4
    %v156 = vadd.f32 %v154, %v155
    %v157 = vrot.slane %v156, 2
    %v158 = vadd.f32 %v156, %v157
    %v159 = vrot.slane %v158, 1
    %v160 = vadd.f32 %v158, %v159
    %161 = vst [vmem:[#allocation9] sm:$0x1] %v160
    %v162 = vsel %vm151, %v145, 0.0
    %v163 = vsel %vm151, %v146, 0.0
    %v164 = vadd.f32 %v162, %v163
    %v165 = vrot.slane %v164, 4
    %v166 = vadd.f32 %v164, %v165
    %v167 = vrot.slane %v166, 2
    %v168 = vadd.f32 %v166, %v167
    %v169 = vrot.slane %v168, 1
    %v170 = vadd.f32 %v168, %v169
    %171 = vst [vmem:[#allocation10] sm:$0x1] %v170
    // Predicated region
    $region26: #{tpu_custom_call.1} parent=1 // pred_check
      _
    $region27: #{tpu_custom_call.1} parent=1 // pred_check_branch
      %173 = sbr.rel (0) target = $region29
    $region28: #{tpu_custom_call.1} parent=1 // pred_region
      %175 = vsyncadd [#allocation4], 0
      %s177 = sshll.u32 [#allocation9], 4
      %s178 = int_to_ptr.vmem [resolvable:$true] %s177
      %s179 = sshll.u32 %s3, 4
      %s180 = int_to_ptr.hbm [resolvable:$true] %s179
      %182 = dma.vmem_to_hbm [thread:$0]  %s178, 16, %s180, [#allocation4]
    $region29: #{tpu_custom_call.1} parent=1 // pred_fallthru
      _
    // Predicated region
    $region30: #{tpu_custom_call.1} parent=1 // pred_check
      _
    $region31: #{tpu_custom_call.1} parent=1 // pred_check_branch
      %184 = sbr.rel (0) target = $region33
    $region32: #{tpu_custom_call.1} parent=1 // pred_region
      %186 = vsyncadd [#allocation11], 0
      %s188 = sshll.u32 [#allocation10], 4
      %s189 = int_to_ptr.vmem [resolvable:$true] %s188
      %s190 = sshll.u32 %s4, 4
      %s191 = int_to_ptr.hbm [resolvable:$true] %s190
      %193 = dma.vmem_to_hbm [thread:$0]  %s189, 16, %s191, [#allocation11]
    $region33: #{tpu_custom_call.1} parent=1 // pred_fallthru
      _
    // Predicated region
    $region34: #{tpu_custom_call.1} parent=1 // pred_check
      _
    $region35: #{tpu_custom_call.1} parent=1 // pred_check_branch
      %195 = sbr.rel (0) target = $region37
    $region36: #{tpu_custom_call.1} parent=1 // pred_region
      %197 = dma.done [#allocation4], 16
    $region37: #{tpu_custom_call.1} parent=1 // pred_fallthru
      _
    // Predicated region
    $region38: #{tpu_custom_call.1} parent=1 // pred_check
      _
    $region39: #{tpu_custom_call.1} parent=1 // pred_check_branch
      %199 = sbr.rel (0) target = $region41
    $region40: #{tpu_custom_call.1} parent=1 // pred_region
      %201 = dma.done [#allocation11], 16
    $region41: #{tpu_custom_call.1} parent=1 // pred_fallthru
      _
    %202 = vsyncpa [#allocation3], 1
    %203 = vsyncpa [#allocation8], 1
    %204 = vsyncpa [#allocation4], 1
    %205 = vsyncpa [#allocation11], 1
    %206 = vsyncpa [#allocation5], 1

</llo_original>
